<compile_context>
chip_gen: v7x
topology: tpu7x:2x2x1
jax: 0.10.0
libtpu: 0.0.40
codegen_flags: <defaults>
</compile_context>

<pallas_src>
import functools

import jax
import jax.numpy as jnp
from jax.experimental import pallas as pl
from jax.experimental.pallas import tpu as pltpu

# ----------------------------------------------------------------------------
# Haar constants (mirror onda.modules.wavelets.haar)
# ----------------------------------------------------------------------------
HORIZONTAL, VERTICAL, UP_DIAGONAL, DOWN_DIAGONAL = 0, 1, 2, 3
LOW_PASS, DETAIL = 0, 1

KERNELS = {
    HORIZONTAL: (
        jnp.array([[0.5, 0.5]], jnp.float32),
        jnp.array([[0.5, -0.5]], jnp.float32),
    ),
    VERTICAL: (
        jnp.array([[0.5], [0.5]], jnp.float32),
        jnp.array([[0.5], [-0.5]], jnp.float32),
    ),
    UP_DIAGONAL: (
        jnp.array([[0.25, 0.25], [0.25, 0.25]], jnp.float32),
        jnp.array([[-0.25, 0.25], [0.25, -0.25]], jnp.float32),
    ),
    DOWN_DIAGONAL: (
        jnp.array([[0.25, 0.25], [0.25, 0.25]], jnp.float32),
        jnp.array([[0.25, -0.25], [-0.25, 0.25]], jnp.float32),
    ),
}

STRIDES = {
    HORIZONTAL: (1, 2),
    VERTICAL: (2, 1),
    UP_DIAGONAL: (2, 2),
    DOWN_DIAGONAL: (2, 2),
}


# ----------------------------------------------------------------------------
# Per-chip budgets (VMEM scoped limit, HBM traffic target per grid step)
# ----------------------------------------------------------------------------
_BUDGET_CACHE = None


def _budgets():
    """(vmem_limit_bytes, step_target_bytes) derived from the chip's VMEM."""
    global _BUDGET_CACHE
    if _BUDGET_CACHE is None:
        cap = None
        try:
            info = pltpu.get_tpu_info()
            for name in ("vmem_capacity_bytes", "vmem_bytes", "vmem_size_bytes",
                         "vmem_capacity"):
                v = getattr(info, name, None)
                if isinstance(v, int) and v > 0:
                    cap = v
                    break
        except Exception:
            cap = None
        if cap is None:
            # Unknown chip: conservative numbers that are legal everywhere.
            _BUDGET_CACHE = (48 * 1024 * 1024, 12 * 1024 * 1024)
        elif cap <= 80 * 1024 * 1024:
            # v7x-class: 64 MiB / TensorCore, but ~2.2x the HBM bandwidth.
            _BUDGET_CACHE = (40 * 1024 * 1024, 8 * 1024 * 1024)
        else:
            # v5e / v6e: 128 MiB physical VMEM.
            _BUDGET_CACHE = (64 * 1024 * 1024, 16 * 1024 * 1024)
    return _BUDGET_CACHE


def _compiler_params(sem, vmem_limit):
    return pltpu.CompilerParams(dimension_semantics=sem,
                                vmem_limit_bytes=vmem_limit)


# ----------------------------------------------------------------------------
# Host-side helpers
# ----------------------------------------------------------------------------
def _round_up(x, m):
    return (x + m - 1) // m * m


def _pick_wc(W, prefs):
    for c in prefs:
        if W % c == 0:
            return c
    return W


def _pick_tm(rows, hbm_row_bytes, vmem_row_bytes, *, target_bytes, vmem_limit,
             align):
    """Row-tile size: ~target HBM bytes per step, clamped by an estimate of the
    live VMEM footprint (double-buffered blocks + in-kernel temporaries), a
    multiple of `align` (8 for 4-byte, 16 for 2-byte dtypes), and >= 2 row
    blocks when the input is big enough (pipelining + v7x megacore)."""
    tm = max(align, target_bytes // max(hbm_row_bytes, 1))
    tm_vmem = max(align, (vmem_limit // 2) // max(vmem_row_bytes, 1))
    tm = min(tm, tm_vmem, rows)
    if tm >= rows and rows >= 2 * align:
        tm = (rows + 1) // 2
    if tm < rows:
        tm = max(align, (tm // align) * align)
    return max(1, min(tm, rows))


def _pair_matrices(wc, tap_scale):
    """Constant (wc, wc//2) matrices that pair adjacent lanes and compact them:
       s_sum[2j, j] = s_sum[2j+1, j] = tap_scale
       s_diff[2j, j] = +tap_scale, s_diff[2j+1, j] = -tap_scale
    tap_scale is 0.5 / 0.25 -> exactly representable in bf16."""
    half = wc // 2
    rows = jnp.arange(wc, dtype=jnp.int32)[:, None]
    cols = jnp.arange(half, dtype=jnp.int32)[None, :]
    hit = (rows // 2) == cols
    s_sum = jnp.where(hit, tap_scale, 0.0).astype(jnp.bfloat16)
    sign = jnp.where(rows % 2 == 0, tap_scale, -tap_scale)
    s_diff = jnp.where(hit, sign, 0.0).astype(jnp.bfloat16)
    return s_sum, s_diff


def _pair_matrix_combined(wc, tap_scale):
    """[s_sum | s_diff] as one (wc, wc) RHS -> one MXU push per part."""
    s_sum, s_diff = _pair_matrices(wc, tap_scale)
    return jnp.concatenate([s_sum, s_diff], axis=1)


# ----------------------------------------------------------------------------
# In-kernel helpers
# ----------------------------------------------------------------------------
def _parts_dot(x, m, num_parts):
    """x @ m on the MXU with an f32-accurate bf16 split of x.
    If x is already bf16 and num_parts == 1 it is fed to the MXU directly
    (no VPU cast passes).  2 parts give ~2^-18 relative accuracy for f32."""
    if x.dtype == jnp.bfloat16 and num_parts == 1:
        return jnp.dot(x, m, preferred_element_type=jnp.float32)
    rem = x.astype(jnp.float32)
    out = None
    for p in range(num_parts):                       # static, fully unrolled
        part = rem.astype(jnp.bfloat16)
        term = jnp.dot(part, m, preferred_element_type=jnp.float32)
        out = term if out is None else out + term
        if p + 1 < num_parts:
            rem = rem - part.astype(jnp.float32)
    return out


# ----------------------------------------------------------------------------
# Pallas kernels: by_channel=True (no channel reduction)
# ----------------------------------------------------------------------------
def _pairw_flat_kernel(x_ref, ssd_ref, low_ref, det_ref, *, num_parts,
                       post_scale):
    """HORIZONTAL, flat view: one combined-RHS matmul, split at 128 lanes."""
    res = _parts_dot(x_ref[...], ssd_ref[...], num_parts)
    if post_scale != 1.0:
        res = res * jnp.float32(post_scale)
    half = low_ref.shape[-1]
    low_ref[...] = res[:, :half].astype(low_ref.dtype)
    det_ref[...] = res[:, half:].astype(det_ref.dtype)


def _pairw_rows_kernel(x_ref, ss_ref, sd_ref, low_ref, det_ref, *, num_parts,
                       post_scale):
    """HORIZONTAL fallback: whole rows, separate low/det matmuls."""
    x = x_ref[...]
    low = _parts_dot(x, ss_ref[...], num_parts)
    det = _parts_dot(x, sd_ref[...], num_parts)
    if post_scale != 1.0:
        s = jnp.float32(post_scale)
        low = low * s
        det = det * s
    low_ref[...] = low.astype(low_ref.dtype)
    det_ref[...] = det.astype(det_ref.dtype)


def _vertical_kernel(*args, packed, scale):
    """VERTICAL: low = scale*(a+b), det = scale*(a-b).  Pure VPU, exact f32."""
    if packed:
        x_ref, low_ref, det_ref = args
        a = x_ref[:, 0, :].astype(jnp.float32)
        b = x_ref[:, 1, :].astype(jnp.float32)
    else:
        a_ref, b_ref, low_ref, det_ref = args
        a = a_ref[...].astype(jnp.float32)
        b = b_ref[...].astype(jnp.float32)
    s = jnp.float32(scale)
    low_ref[...] = ((a + b) * s).astype(low_ref.dtype)
    det_ref[...] = ((a - b) * s).astype(det_ref.dtype)


def _diag_kernel(*args, packed, flip, num_parts, post_scale):
    """DIAGONAL: u = a+b, v = +-(a-b); pair adjacent lanes via MXU matrices."""
    if packed:
        x_ref, ss_ref, sd_ref, low_ref, det_ref = args
        a = x_ref[:, 0, :].astype(jnp.float32)
        b = x_ref[:, 1, :].astype(jnp.float32)
    else:
        a_ref, b_ref, ss_ref, sd_ref, low_ref, det_ref = args
        a = a_ref[...].astype(jnp.float32)
        b = b_ref[...].astype(jnp.float32)
    u = a + b
    v = (b - a) if flip else (a - b)
    low = _parts_dot(u, ss_ref[...], num_parts)
    det = _parts_dot(v, sd_ref[...], num_parts)
    if post_scale != 1.0:
        s = jnp.float32(post_scale)
        low = low * s
        det = det * s
    low_ref[...] = low.astype(low_ref.dtype)
    det_ref[...] = det.astype(det_ref.dtype)


# ----------------------------------------------------------------------------
# Pallas kernels: by_channel=False (channel reduction fused into the grid;
# the channel axis is the last ("arbitrary") grid axis, sums live in f32 VMEM)
# ----------------------------------------------------------------------------
def _pairw_reduce_kernel(x_ref, ssd_ref, low_ref, det_ref, u_acc, *, num_parts,
                         inv_c, c_axis):
    c = pl.program_id(c_axis)

    @pl.when(c == 0)
    def _():
        u_acc[...] = jnp.zeros_like(u_acc)

    u_acc[...] += x_ref[...].astype(jnp.float32)

    @pl.when(c == pl.num_programs(c_axis) - 1)
    def _():
        res = _parts_dot(u_acc[...], ssd_ref[...], num_parts)
        res = res * jnp.float32(inv_c)
        half = low_ref.shape[-1]
        low_ref[...] = res[:, :half].astype(low_ref.dtype)
        det_ref[...] = res[:, half:].astype(det_ref.dtype)


def _vertical_reduce_kernel(a_ref, b_ref, low_ref, det_ref, lo_acc, de_acc, *,
                            scale, c_axis):
    c = pl.program_id(c_axis)
    a = a_ref[...].astype(jnp.float32)
    b = b_ref[...].astype(jnp.float32)

    @pl.when(c == 0)
    def _():
        lo_acc[...] = jnp.zeros_like(lo_acc)
        de_acc[...] = jnp.zeros_like(de_acc)

    lo_acc[...] += a + b
    de_acc[...] += a - b

    @pl.when(c == pl.num_programs(c_axis) - 1)
    def _():
        s = jnp.float32(scale)
        low_ref[...] = (lo_acc[...] * s).astype(low_ref.dtype)
        det_ref[...] = (de_acc[...] * s).astype(det_ref.dtype)


def _diag_reduce_kernel(a_ref, b_ref, ss_ref, sd_ref, low_ref, det_ref,
                        u_acc, v_acc, *, flip, num_parts, inv_c, c_axis):
    c = pl.program_id(c_axis)
    a = a_ref[...].astype(jnp.float32)
    b = b_ref[...].astype(jnp.float32)

    @pl.when(c == 0)
    def _():
        u_acc[...] = jnp.zeros_like(u_acc)
        v_acc[...] = jnp.zeros_like(v_acc)

    u_acc[...] += a + b
    v_acc[...] += (b - a) if flip else (a - b)

    @pl.when(c == pl.num_programs(c_axis) - 1)
    def _():
        s = jnp.float32(inv_c)
        low_ref[...] = (_parts_dot(u_acc[...], ss_ref[...], num_parts) * s
                        ).astype(low_ref.dtype)
        det_ref[...] = (_parts_dot(v_acc[...], sd_ref[...], num_parts) * s
                        ).astype(det_ref.dtype)


# ----------------------------------------------------------------------------
# pallas_call builders: by_channel=True
# ----------------------------------------------------------------------------
def _run_horizontal(x_any, *, out_dtype, num_parts, post_scale):
    """Pairs adjacent elements along the (even-length) last dim.  Because the
    array is contiguous and every row length is even, this equals pairing the
    flat array, so the whole tensor is presented as lane-dense (R, 256)."""
    W = x_any.shape[-1]
    N = int(x_any.size)
    isz = x_any.dtype.itemsize
    osz = jnp.dtype(out_dtype).itemsize
    align = 16 if isz <= 2 else 8
    vmem_limit, step_target = _budgets()

    if N % 256 == 0:
        vc = 256                              # keeps MXU < HBM roofline on v5e
        R = N // vc
        x2 = x_any.reshape(R, vc)
        ssd = _pair_matrix_combined(vc, 0.5)
        hbm_row = vc * isz + vc * osz
        vmem_row = 2 * vc * isz + 2 * vc * osz + 16 * vc
        tm = _pick_tm(R, hbm_row, vmem_row, target_bytes=step_target,
                      vmem_limit=vmem_limit, align=align)
        grid = (pl.cdiv(R, tm),)
        out_sds = jax.ShapeDtypeStruct((R, vc // 2), out_dtype)
        kernel = functools.partial(_pairw_flat_kernel, num_parts=num_parts,
                                   post_scale=post_scale)
        return pl.pallas_call(
            kernel,
            out_shape=(out_sds, out_sds),
            grid=grid,
            in_specs=[
                pl.BlockSpec((tm, vc), lambda i: (i, 0)),
                pl.BlockSpec((vc, vc), lambda i: (0, 0)),
            ],
            out_specs=(
                pl.BlockSpec((tm, vc // 2), lambda i: (i, 0)),
                pl.BlockSpec((tm, vc // 2), lambda i: (i, 0)),
            ),
            compiler_params=_compiler_params(("parallel",), vmem_limit),
        )(x2, ssd)

    # Fallback: whole rows.  TODO(synk): very large W with no 128 divisor
    # builds a (W, W/2) selection matrix and a K=W matmul; modest W only.
    R = N // W
    x2 = x_any.reshape(R, W)
    Wp = _round_up(W, 128)
    hbm_row = W * isz + W * osz
    vmem_row = 2 * Wp * isz + 2 * Wp * osz + 16 * Wp
    tm = _pick_tm(R, hbm_row, vmem_row, target_bytes=step_target,
                  vmem_limit=vmem_limit, align=align)
    grid = (pl.cdiv(R, tm),)
    ss, sd = _pair_matrices(W, 0.5)
    out_sds = jax.ShapeDtypeStruct((R, W // 2), out_dtype)
    kernel = functools.partial(_pairw_rows_kernel, num_parts=num_parts,
                               post_scale=post_scale)
    return pl.pallas_call(
        kernel,
        out_shape=(out_sds, out_sds),
        grid=grid,
        in_specs=[
            pl.BlockSpec((tm, W), lambda i: (i, 0)),
            pl.BlockSpec((W, W // 2), lambda i: (0, 0)),
            pl.BlockSpec((W, W // 2), lambda i: (0, 0)),
        ],
        out_specs=(
            pl.BlockSpec((tm, W // 2), lambda i: (i, 0)),
            pl.BlockSpec((tm, W // 2), lambda i: (i, 0)),
        ),
        compiler_params=_compiler_params(("parallel",), vmem_limit),
    )(x2, ss, sd)


def _run_vertical(x3, *, scale, out_dtype):
    """VERTICAL: x3 is (M, 2, W); outputs (M, W) each (pure VPU)."""
    M, _, W = x3.shape
    isz = x3.dtype.itemsize
    osz = jnp.dtype(out_dtype).itemsize
    align = 16 if isz <= 2 else 8
    vmem_limit, step_target = _budgets()
    out_sds = jax.ShapeDtypeStruct((M, W), out_dtype)

    if W % 128 == 0:
        # The DMA de-interleaves even/odd rows: two BlockSpecs over the same
        # free (M, 2W) view of x.
        wc = _pick_wc(W, (512, 256, 128))
        nwc = W // wc
        hbm_row = 2 * wc * isz + 2 * wc * osz
        vmem_row = 4 * wc * isz + 4 * wc * osz + 16 * wc
        tm = _pick_tm(M, hbm_row, vmem_row, target_bytes=step_target,
                      vmem_limit=vmem_limit, align=align)
        grid = (pl.cdiv(M, tm), nwc)
        xm = x3.reshape(M, 2 * W)
        kernel = functools.partial(_vertical_kernel, packed=False, scale=scale)
        return pl.pallas_call(
            kernel,
            out_shape=(out_sds, out_sds),
            grid=grid,
            in_specs=[
                pl.BlockSpec((tm, wc), lambda i, j: (i, j)),
                pl.BlockSpec((tm, wc), lambda i, j, n=nwc: (i, j + n)),
            ],
            out_specs=(
                pl.BlockSpec((tm, wc), lambda i, j: (i, j)),
                pl.BlockSpec((tm, wc), lambda i, j: (i, j)),
            ),
            compiler_params=_compiler_params(("parallel", "parallel"),
                                             vmem_limit),
        )(xm, xm)

    # Packed fallback (W not a multiple of 128): whole (2, W) row pairs.
    Wp = _round_up(W, 128)
    hbm_row = 2 * W * isz + 2 * W * osz
    vmem_row = 4 * Wp * isz + 4 * Wp * osz + 16 * Wp
    tm = _pick_tm(M, hbm_row, vmem_row, target_bytes=step_target,
                  vmem_limit=vmem_limit, align=align)
    grid = (pl.cdiv(M, tm),)
    kernel = functools.partial(_vertical_kernel, packed=True, scale=scale)
    return pl.pallas_call(
        kernel,
        out_shape=(out_sds, out_sds),
        grid=grid,
        in_specs=[pl.BlockSpec((tm, 2, W), lambda i: (i, 0, 0))],
        out_specs=(
            pl.BlockSpec((tm, W), lambda i: (i, 0)),
            pl.BlockSpec((tm, W), lambda i: (i, 0)),
        ),
        compiler_params=_compiler_params(("parallel",), vmem_limit),
    )(x3)


def _run_diagonal(x3, *, out_dtype, num_parts, post_scale, flip):
    """DIAGONAL: x3 is (M, 2, W); outputs (M, W//2) each."""
    M, _, W = x3.shape
    isz = x3.dtype.itemsize
    osz = jnp.dtype(out_dtype).itemsize
    align = 16 if isz <= 2 else 8
    vmem_limit, step_target = _budgets()
    out_sds = jax.ShapeDtypeStruct((M, W // 2), out_dtype)

    if W % 256 == 0 or W == 128:
        # Lane-dense path only when the per-step output block is legal/dense.
        wc = 256 if W % 256 == 0 else 128
        half = wc // 2
        nwc = W // wc
        hbm_row = 2 * wc * isz + 2 * half * osz
        vmem_row = 4 * wc * isz + 4 * half * osz + 28 * wc
        tm = _pick_tm(M, hbm_row, vmem_row, target_bytes=step_target,
                      vmem_limit=vmem_limit, align=align)
        grid = (pl.cdiv(M, tm), nwc)
        ss, sd = _pair_matrices(wc, 0.25)
        xm = x3.reshape(M, 2 * W)
        kernel = functools.partial(_diag_kernel, packed=False, flip=flip,
                                   num_parts=num_parts, post_scale=post_scale)
        return pl.pallas_call(
            kernel,
            out_shape=(out_sds, out_sds),
            grid=grid,
            in_specs=[
                pl.BlockSpec((tm, wc), lambda i, j: (i, j)),
                pl.BlockSpec((tm, wc), lambda i, j, n=nwc: (i, j + n)),
                pl.BlockSpec((wc, half), lambda i, j: (0, 0)),
                pl.BlockSpec((wc, half), lambda i, j: (0, 0)),
            ],
            out_specs=(
                pl.BlockSpec((tm, half), lambda i, j: (i, j)),
                pl.BlockSpec((tm, half), lambda i, j: (i, j)),
            ),
            compiler_params=_compiler_params(("parallel", "parallel"),
                                             vmem_limit),
        )(xm, xm, ss, sd)

    # Packed fallback (any even W).
    # TODO(synk): for W = 384, 640, ... the output width is not a multiple of
    # 128 -> the tail of each store is masked; pack two row tiles to fix.
    Wp = _round_up(W, 128)
    hbm_row = 2 * W * isz + W * osz
    vmem_row = 4 * Wp * isz + 2 * Wp * osz + 28 * Wp
    tm = _pick_tm(M, hbm_row, vmem_row, target_bytes=step_target,
                  vmem_limit=vmem_limit, align=align)
    grid = (pl.cdiv(M, tm),)
    ss, sd = _pair_matrices(W, 0.25)
    kernel = functools.partial(_diag_kernel, packed=True, flip=flip,
                               num_parts=num_parts, post_scale=post_scale)
    return pl.pallas_call(
        kernel,
        out_shape=(out_sds, out_sds),
        grid=grid,
        in_specs=[
            pl.BlockSpec((tm, 2, W), lambda i: (i, 0, 0)),
            pl.BlockSpec((W, W // 2), lambda i: (0, 0)),
            pl.BlockSpec((W, W // 2), lambda i: (0, 0)),
        ],
        out_specs=(
            pl.BlockSpec((tm, W // 2), lambda i: (i, 0)),
            pl.BlockSpec((tm, W // 2), lambda i: (i, 0)),
        ),
        compiler_params=_compiler_params(("parallel",), vmem_limit),
    )(x3, ss, sd)


# ----------------------------------------------------------------------------
# pallas_call builders: by_channel=False with the channel sum fused in-grid
# ----------------------------------------------------------------------------
def _run_horizontal_reduce(x, *, inv_c, out_dtype):
    B, C, H, W = x.shape
    vc = 256
    Rp = (H * W) // vc
    xv = x.reshape(B * C, Rp, vc)
    isz = x.dtype.itemsize
    osz = jnp.dtype(out_dtype).itemsize
    align = 16 if isz <= 2 else 8
    vmem_limit, step_target = _budgets()
    hbm_row = vc * isz                           # dominant per-step traffic
    vmem_row = 2 * vc * isz + 4 * (vc // 2) * osz + vc * 4 + 12 * vc
    tm = _pick_tm(Rp, hbm_row, vmem_row, target_bytes=step_target,
                  vmem_limit=vmem_limit, align=align)
    grid = (B, pl.cdiv(Rp, tm), C)
    ssd = _pair_matrix_combined(vc, 0.5)
    out_sds = jax.ShapeDtypeStruct((B, Rp, vc // 2), out_dtype)
    kernel = functools.partial(_pairw_reduce_kernel, num_parts=2, inv_c=inv_c,
                               c_axis=2)
    return pl.pallas_call(
        kernel,
        out_shape=(out_sds, out_sds),
        grid=grid,
        in_specs=[
            pl.BlockSpec((None, tm, vc), lambda b, i, c, C=C: (b * C + c, i, 0)),
            pl.BlockSpec((vc, vc), lambda b, i, c: (0, 0)),
        ],
        out_specs=(
            pl.BlockSpec((None, tm, vc // 2), lambda b, i, c: (b, i, 0)),
            pl.BlockSpec((None, tm, vc // 2), lambda b, i, c: (b, i, 0)),
        ),
        scratch_shapes=[pltpu.VMEM((tm, vc), jnp.float32)],
        compiler_params=_compiler_params(("parallel", "parallel", "arbitrary"),
                                         vmem_limit),
    )(xv, ssd)


def _run_vertical_reduce(x, *, scale, out_dtype):
    B, C, H, W = x.shape
    M = H // 2
    xv = x.reshape(B * C, M, 2 * W)
    isz = x.dtype.itemsize
    osz = jnp.dtype(out_dtype).itemsize
    align = 16 if isz <= 2 else 8
    vmem_limit, step_target = _budgets()
    wc = _pick_wc(W, (512, 256, 128))
    nwc = W // wc
    hbm_row = 2 * wc * isz
    vmem_row = 4 * wc * isz + 4 * wc * osz + 2 * wc * 4 + 8 * wc
    tm = _pick_tm(M, hbm_row, vmem_row, target_bytes=step_target,
                  vmem_limit=vmem_limit, align=align)
    grid = (B, pl.cdiv(M, tm), nwc, C)
    out_sds = jax.ShapeDtypeStruct((B, M, W), out_dtype)
    kernel = functools.partial(_vertical_reduce_kernel, scale=scale, c_axis=3)
    return pl.pallas_call(
        kernel,
        out_shape=(out_sds, out_sds),
        grid=grid,
        in_specs=[
            pl.BlockSpec((None, tm, wc),
                         lambda b, i, j, c, C=C: (b * C + c, i, j)),
            pl.BlockSpec((None, tm, wc),
                         lambda b, i, j, c, C=C, n=nwc: (b * C + c, i, j + n)),
        ],
        out_specs=(
            pl.BlockSpec((None, tm, wc), lambda b, i, j, c: (b, i, j)),
            pl.BlockSpec((None, tm, wc), lambda b, i, j, c: (b, i, j)),
        ),
        scratch_shapes=[pltpu.VMEM((tm, wc), jnp.float32),
                        pltpu.VMEM((tm, wc), jnp.float32)],
        compiler_params=_compiler_params(
            ("parallel", "parallel", "parallel", "arbitrary"), vmem_limit),
    )(xv, xv)


def _run_diagonal_reduce(x, *, inv_c, out_dtype, flip):
    B, C, H, W = x.shape
    M = H // 2
    xv = x.reshape(B * C, M, 2 * W)
    isz = x.dtype.itemsize
    osz = jnp.dtype(out_dtype).itemsize
    align = 16 if isz <= 2 else 8
    vmem_limit, step_target = _budgets()
    wc = 256 if W % 256 == 0 else 128            # caller guarantees legality
    half = wc // 2
    nwc = W // wc
    hbm_row = 2 * wc * isz
    vmem_row = 4 * wc * isz + 4 * half * osz + 2 * wc * 4 + 20 * wc
    tm = _pick_tm(M, hbm_row, vmem_row, target_bytes=step_target,
                  vmem_limit=vmem_limit, align=align)
    grid = (B, pl.cdiv(M, tm), nwc, C)
    ss, sd = _pair_matrices(wc, 0.25)
    out_sds = jax.ShapeDtypeStruct((B, M, W // 2), out_dtype)
    kernel = functools.partial(_diag_reduce_kernel, flip=flip, num_parts=2,
                               inv_c=inv_c, c_axis=3)
    return pl.pallas_call(
        kernel,
        out_shape=(out_sds, out_sds),
        grid=grid,
        in_specs=[
            pl.BlockSpec((None, tm, wc),
                         lambda b, i, j, c, C=C: (b * C + c, i, j)),
            pl.BlockSpec((None, tm, wc),
                         lambda b, i, j, c, C=C, n=nwc: (b * C + c, i, j + n)),
            pl.BlockSpec((wc, half), lambda b, i, j, c: (0, 0)),
            pl.BlockSpec((wc, half), lambda b, i, j, c: (0, 0)),
        ],
        out_specs=(
            pl.BlockSpec((None, tm, half), lambda b, i, j, c: (b, i, j)),
            pl.BlockSpec((None, tm, half), lambda b, i, j, c: (b, i, j)),
        ),
        scratch_shapes=[pltpu.VMEM((tm, wc), jnp.float32),
                        pltpu.VMEM((tm, wc), jnp.float32)],
        compiler_params=_compiler_params(
            ("parallel", "parallel", "parallel", "arbitrary"), vmem_limit),
    )(xv, xv, ss, sd)


# ----------------------------------------------------------------------------
# Module-equivalent wrapper
# ----------------------------------------------------------------------------
class HaarConv2D:
    """JAX/Pallas port of onda HaarConv2D.  Input layout: NCHW."""

    def __init__(self, orientation, in_channels=3, by_channel=True):
        assert orientation in (HORIZONTAL, VERTICAL, UP_DIAGONAL, DOWN_DIAGONAL)
        self._orientation = orientation
        self._in_channels = in_channels
        self._by_channel = by_channel

    def __call__(self, x):
        B, C, H, W = x.shape
        o = self._orientation
        if o in (VERTICAL, UP_DIAGONAL, DOWN_DIAGONAL):
            assert H % 2 == 0, "height must be even for this orientation"
        if o in (HORIZONTAL, UP_DIAGONAL, DOWN_DIAGONAL):
            assert W % 2 == 0, "width must be even for this orientation"

        out_dtype = x.dtype
        if self._by_channel:
            return self._per_channel(x, post_scale=1.0, out_dtype=out_dtype)

        fused = self._fused_reduce(x, out_dtype)
        if fused is not None:
            return fused
        # TODO(synk): fuse the channel reduction into the kernel grid for
        # non-lane-dense widths as well (this fallback costs one extra XLA
        # HBM pass for the f32 channel sum).
        x_sum = jnp.sum(x.astype(jnp.float32), axis=1, keepdims=True)
        return self._per_channel(x_sum,
                                 post_scale=1.0 / float(self._in_channels),
                                 out_dtype=out_dtype)

    # -- by_channel=True (or pre-reduced fallback) ---------------------------
    def _per_channel(self, x4, *, post_scale, out_dtype):
        B, Cw, H, W = x4.shape
        o = self._orientation
        bf16_in = x4.dtype == jnp.bfloat16
        if o == HORIZONTAL:
            low, det = _run_horizontal(
                x4, out_dtype=out_dtype,
                num_parts=1 if bf16_in else 2,
                post_scale=post_scale)
            return (low.reshape(B, Cw, H, W // 2),
                    det.reshape(B, Cw, H, W // 2))
        M = B * Cw * (H // 2)
        x3 = x4.reshape(M, 2, W)
        if o == VERTICAL:
            low, det = _run_vertical(x3, scale=0.5 * post_scale,
                                     out_dtype=out_dtype)
            return (low.reshape(B, Cw, H // 2, W),
                    det.reshape(B, Cw, H // 2, W))
        low, det = _run_diagonal(x3, out_dtype=out_dtype, num_parts=2,
                                 post_scale=post_scale,
                                 flip=(o == UP_DIAGONAL))
        return (low.reshape(B, Cw, H // 2, W // 2),
                det.reshape(B, Cw, H // 2, W // 2))

    # -- by_channel=False, channel sum fused in the grid ---------------------
    def _fused_reduce(self, x, out_dtype):
        B, C, H, W = x.shape
        o = self._orientation
        inv_c = 1.0 / float(self._in_channels)
        if o == HORIZONTAL:
            if (H * W) % 256 != 0:
                return None
            low, det = _run_horizontal_reduce(x, inv_c=inv_c,
                                              out_dtype=out_dtype)
            return (low.reshape(B, 1, H, W // 2),
                    det.reshape(B, 1, H, W // 2))
        if o == VERTICAL:
            if W % 128 != 0:
                return None
            low, det = _run_vertical_reduce(x, scale=0.5 * inv_c,
                                            out_dtype=out_dtype)
            return (low.reshape(B, 1, H // 2, W),
                    det.reshape(B, 1, H // 2, W))
        if not (W % 256 == 0 or W == 128):
            return None
        low, det = _run_diagonal_reduce(x, inv_c=inv_c, out_dtype=out_dtype,
                                        flip=(o == UP_DIAGONAL))
        return (low.reshape(B, 1, H // 2, W // 2),
                det.reshape(B, 1, H // 2, W // 2))


# ----------------------------------------------------------------------------
# Pure-JAX reference (explicit strided slicing, f32 accumulation)
# ----------------------------------------------------------------------------
def _reference(x, orientation, in_channels, by_channel=True):
    lp_k, dt_k = KERNELS[orientation]
    sh, sw = STRIDES[orientation]
    kh, kw = lp_k.shape
    B, C, H, W = x.shape
    H_out = (H - kh) // sh + 1
    W_out = (W - kw) // sw + 1
    xf = x.astype(jnp.float32)

    def conv_single(k):
        acc = jnp.zeros((B, C, H_out, W_out), jnp.float32)
        for i in range(kh):
            for j in range(kw):
                acc = acc + k[i, j] * xf[:, :, i:i + sh * H_out:sh,
                                         j:j + sw * W_out:sw]
        return acc

    low = conv_single(lp_k)
    det = conv_single(dt_k)
    if not by_channel:
        low = jnp.sum(low, axis=1, keepdims=True) / in_channels
        det = jnp.sum(det, axis=1, keepdims=True) / in_channels
    return low.astype(x.dtype), det.astype(x.dtype)


# ----------------------------------------------------------------------------
# Self-test
# ----------------------------------------------------------------------------
if __name__ == "__main__":
    def check(x, orientation, by_channel, atol, rtol):
        mod = HaarConv2D(orientation, in_channels=x.shape[1],
                         by_channel=by_channel)
        low, det = mod(x)
        jax.block_until_ready(low)
        jax.block_until_ready(det)
        low_r, det_r = _reference(x, orientation, x.shape[1], by_channel)
        assert low.shape == low_r.shape and det.shape == det_r.shape, (
            orientation, by_channel, low.shape, low_r.shape)
        assert low.dtype == x.dtype and det.dtype == x.dtype
        assert jnp.allclose(low.astype(jnp.float32), low_r.astype(jnp.float32),
                            atol=atol, rtol=rtol), (orientation, by_channel, "low")
        assert jnp.allclose(det.astype(jnp.float32), det_r.astype(jnp.float32),
                            atol=atol, rtol=rtol), (orientation, by_channel, "det")

    key = jax.random.PRNGKey(0)
    k0, k1, k2, k3 = jax.random.split(key, 4)

    # Main small NCHW demo: flat HORIZONTAL, fused HORIZONTAL reduction,
    # packed VERTICAL/DIAGONAL fallbacks and the jnp.sum fallback.
    x_small = jax.random.normal(k0, (2, 4, 16, 16), dtype=jnp.float32)
    for orientation in (HORIZONTAL, VERTICAL, UP_DIAGONAL, DOWN_DIAGONAL):
        for by_channel in (True, False):
            check(x_small, orientation, by_channel, 3e-4, 3e-4)

    # Lane-dense dual-tap paths and fused channel-reduction paths (W = 256).
    x_wide = jax.random.normal(k1, (1, 2, 8, 256), dtype=jnp.float32)
    for orientation, by_channel in ((VERTICAL, True), (VERTICAL, False),
                                    (UP_DIAGONAL, True), (UP_DIAGONAL, False),
                                    (DOWN_DIAGONAL, True), (HORIZONTAL, False)):
        check(x_wide, orientation, by_channel, 3e-4, 3e-4)

    # Odd width (not a multiple of 128): row / packed fallbacks.
    x_odd = jax.random.normal(k2, (1, 3, 6, 10), dtype=jnp.float32)
    for orientation in (HORIZONTAL, VERTICAL, DOWN_DIAGONAL):
        check(x_odd, orientation, True, 3e-4, 3e-4)
    check(x_odd, UP_DIAGONAL, False, 3e-4, 3e-4)

    # bf16 stays bf16 end-to-end (halved HBM read bytes; HORIZONTAL feeds the
    # MXU bf16 directly, fused reduction accumulates in f32 VMEM).
    x_bf16 = jax.random.normal(k3, (1, 2, 8, 256)).astype(jnp.bfloat16)
    check(x_bf16, HORIZONTAL, True, 2e-2, 2e-2)
    check(x_bf16, UP_DIAGONAL, True, 2e-2, 2e-2)
    check(x_bf16, DOWN_DIAGONAL, False, 2e-2, 2e-2)

    print("KERNEL_OK")
</pallas_src>

<mosaic_0001>
module attributes {stable_mosaic.version = 11 : i64} {
  func.func @_pairw_flat_kernel(%arg0: i32, %arg1: memref<8x256xf32, #tpu.memory_space<vmem>>, %arg2: memref<256x256xbf16, #tpu.memory_space<vmem>>, %arg3: memref<8x128xf32, #tpu.memory_space<vmem>>, %arg4: memref<8x128xf32, #tpu.memory_space<vmem>>) attributes {dimension_semantics = [#tpu.dimension_semantics<parallel>], iteration_bounds = array<i64: 1>, scalar_prefetch = 0 : i64, scratch_operands = 0 : i64, tpu.core_type = #tpu.core_type<tc>, window_params = [{transform_indices = @transform_0, window_bounds = array<i64: 8, 256>}, {pipeline_mode = #tpu.pipeline_mode<synchronous>, transform_indices = @transform_1, window_bounds = array<i64: 256, 256>}, {transform_indices = @transform_2, window_bounds = array<i64: 8, 128>}, {transform_indices = @transform_3, window_bounds = array<i64: 8, 128>}]} {
    %c0 = arith.constant 0 : index
    %c0_0 = arith.constant 0 : index
    %0 = vector.load %arg1[%c0, %c0_0] : memref<8x256xf32, #tpu.memory_space<vmem>>, vector<8x256xf32>
    %c0_1 = arith.constant 0 : index
    %c0_2 = arith.constant 0 : index
    %1 = vector.load %arg2[%c0_1, %c0_2] : memref<256x256xbf16, #tpu.memory_space<vmem>>, vector<256x256xbf16>
    %2 = arith.truncf %0 : vector<8x256xf32> to vector<8x256xbf16>
    %cst = arith.constant dense<0.000000e+00> : vector<8x256xf32>
    %3 = tpu.matmul %2, %1, %cst {dimension_numbers = #tpu.dot_dimension_numbers<[1], [0], [0], [1], [0, 0, 1, 1], [], []>} : vector<8x256xbf16>, vector<256x256xbf16>, vector<8x256xf32> -> vector<8x256xf32>
    %4 = arith.extf %2 : vector<8x256xbf16> to vector<8x256xf32>
    %5 = arith.subf %0, %4 : vector<8x256xf32>
    %6 = arith.truncf %5 : vector<8x256xf32> to vector<8x256xbf16>
    %cst_3 = arith.constant dense<0.000000e+00> : vector<8x256xf32>
    %7 = tpu.matmul %6, %1, %cst_3 {dimension_numbers = #tpu.dot_dimension_numbers<[1], [0], [0], [1], [0, 0, 1, 1], [], []>} : vector<8x256xbf16>, vector<256x256xbf16>, vector<8x256xf32> -> vector<8x256xf32>
    %8 = arith.addf %3, %7 : vector<8x256xf32>
    %9 = vector.extract_strided_slice %8 {offsets = [0, 0], sizes = [8, 128], strides = [1, 1]} : vector<8x256xf32> to vector<8x128xf32>
    %c0_4 = arith.constant 0 : index
    %c0_5 = arith.constant 0 : index
    %10 = vector.load %arg3[%c0_4, %c0_5] : memref<8x128xf32, #tpu.memory_space<vmem>>, vector<8x128xf32>
    tpu.vector_store %arg3[%c0_4, %c0_5], %9 {strides = array<i32>} : memref<8x128xf32, #tpu.memory_space<vmem>>, vector<8x128xf32>,
    %11 = vector.extract_strided_slice %8 {offsets = [0, 128], sizes = [8, 128], strides = [1, 1]} : vector<8x256xf32> to vector<8x128xf32>
    %c0_6 = arith.constant 0 : index
    %c0_7 = arith.constant 0 : index
    %12 = vector.load %arg4[%c0_6, %c0_7] : memref<8x128xf32, #tpu.memory_space<vmem>>, vector<8x128xf32>
    tpu.vector_store %arg4[%c0_6, %c0_7], %11 {strides = array<i32>} : memref<8x128xf32, #tpu.memory_space<vmem>>, vector<8x128xf32>,
    return
  }
  func.func @transform_0(%arg0: i32) -> (i32, i32) {
    %c0_i32 = arith.constant 0 : i32
    %c0_i32_0 = arith.constant 0 : i32
    return %arg0, %c0_i32 : i32, i32
  }
  func.func @transform_1(%arg0: i32) -> (i32, i32) {
    %c0_i32 = arith.constant 0 : i32
    %c0_i32_0 = arith.constant 0 : i32
    %c0_i32_1 = arith.constant 0 : i32
    return %c0_i32, %c0_i32_0 : i32, i32
  }
  func.func @transform_2(%arg0: i32) -> (i32, i32) {
    %c0_i32 = arith.constant 0 : i32
    %c0_i32_0 = arith.constant 0 : i32
    return %arg0, %c0_i32 : i32, i32
  }
  func.func @transform_3(%arg0: i32) -> (i32, i32) {
    %c0_i32 = arith.constant 0 : i32
    %c0_i32_0 = arith.constant 0 : i32
    return %arg0, %c0_i32 : i32, i32
  }
}

</mosaic_0001>

<llo_original>
// kernel: tpu_custom_call.1
$region0: #{tpu_custom_call.1}
  #allocation0 [shape = 'u32[]', space=smem, size = 0x4, offset = 0x4, fixed_abs, tag = 'smem constant byte address 0x4 - core index']
  #allocation1 [shape = 'u32[144,128]{1,0:T(1,128)}', space=vmem, size = 0x12000, scoped, tag = 'internal scratch']
  %s0 = inlined_call_operand.hbm [shape: f32[8,256], index: 0, kind: input, shape index: {}]
  %s1 = inlined_call_operand.hbm [shape: bf16[256,256], index: 1, kind: input, shape index: {}]
  %s2 = inlined_call_operand.hbm [shape: f32[8,128], index: 2, kind: output, shape index: {0}]
  %s3 = inlined_call_operand.hbm [shape: f32[8,128], index: 3, kind: output, shape index: {1}]
  %4 = xla_tuple %s2, %s3
  %s5 = sld [smem:[#allocation0]]
  $region34: #{tpu_custom_call.1} parent=0
    _
  %s7 = ssub.s32 1, %s5
  %s8 = scalar_select 0, %s7, %s5
  $region1: #{tpu_custom_call.1} parent=0
    #allocation2 [shape = 'u8[8192]{0}', space=vmem, size = 0x2000, scoped, tag = 'input window, operand 0, single buffered']
    #allocation3 [shape = 's32[1]{0}', space=sflag, size = 0x4, scoped, tag = 'scoped memory for tpu_custom_call.1']
    #allocation4 [shape = 's32[1]{0}', space=sflag, size = 0x4, scoped, tag = 'scoped memory for tpu_custom_call.1']
    #allocation5 [shape = 'u8[131072]{0}', space=vmem, size = 0x20000, scoped, tag = 'input window, operand 1, single buffered']
    #allocation6 [shape = 's32[1]{0}', space=sflag, size = 0x4, scoped, tag = 'scoped memory for tpu_custom_call.1']
    #allocation7 [shape = 'u8[4096]{0}', space=vmem, size = 0x1000, scoped, tag = 'output window, operand 0, single buffered']
    #allocation8 [shape = 'u8[4096]{0}', space=vmem, size = 0x1000, scoped, tag = 'output window, operand 1, single buffered']
    #allocation9 [shape = 's32[1]{0}', space=sflag, size = 0x4, scoped, tag = 'scoped memory for tpu_custom_call.1']
    %9 = vsyncpa [#allocation3], 0
    %10 = vsyncpa [#allocation6], 0
    %11 = vsyncpa [#allocation4], 0
    %12 = vsyncpa [#allocation9], 0
    // Predicated region
    $region2: #{tpu_custom_call.1} parent=1 // pred_check
      _
    $region3: #{tpu_custom_call.1} parent=1 // pred_check_branch
      %14 = sbr.rel (0) target = $region5
    $region4: #{tpu_custom_call.1} parent=1 // pred_region
      %s16 = ssub.s32 256, 256
      %17 = vsyncadd [#allocation3], %s16
      %s19 = sshll.u32 [#allocation2], 4
      %s20 = int_to_ptr.vmem [resolvable:$true] %s19
      %22 = dma.hbm_to_vmem [thread:$0]  %s0, 256, %s20, [#allocation3]
    $region5: #{tpu_custom_call.1} parent=1 // pred_fallthru
      _
    // Predicated region
    $region6: #{tpu_custom_call.1} parent=1 // pred_check
      _
    $region7: #{tpu_custom_call.1} parent=1 // pred_check_branch
      %24 = sbr.rel (0) target = $region9
    $region8: #{tpu_custom_call.1} parent=1 // pred_region
      %s26 = ssub.s32 4096, 4096
      %27 = vsyncadd [#allocation6], %s26
      %s28 = sshll.u32 [#allocation5], 4
      %s29 = int_to_ptr.vmem [resolvable:$true] %s28
      %34 = dma.hbm_to_vmem [thread:$0]  %s1, 4096, %s29, [#allocation6], 128, 128, 8
    $region9: #{tpu_custom_call.1} parent=1 // pred_fallthru
      _
    // Predicated region
    $region10: #{tpu_custom_call.1} parent=1 // pred_check
      _
    $region11: #{tpu_custom_call.1} parent=1 // pred_check_branch
      %36 = sbr.rel (0) target = $region13
    $region12: #{tpu_custom_call.1} parent=1 // pred_region
      %37 = dma.done [#allocation3], 256
    $region13: #{tpu_custom_call.1} parent=1 // pred_fallthru
      _
    // Predicated region
    $region14: #{tpu_custom_call.1} parent=1 // pred_check
      _
    $region15: #{tpu_custom_call.1} parent=1 // pred_check_branch
      %39 = sbr.rel (0) target = $region17
    $region16: #{tpu_custom_call.1} parent=1 // pred_region
      %40 = dma.done [#allocation6], 4096
    $region17: #{tpu_custom_call.1} parent=1 // pred_fallthru
      _
    %v41 = vld [vmem:[#allocation2] sm:$0xff]
    %v42 = vld [vmem:[#allocation2 + $0x8] sm:$0xff]
    %v43 = vld [vmem:[#allocation5] sm:$0xff]
    %v44 = vld [vmem:[#allocation5 + $0x8] sm:$0xff]
    %v45 = vld [vmem:[#allocation5 + $0x10] sm:$0xff]
    %v46 = vld [vmem:[#allocation5 + $0x18] sm:$0xff]
    %v47 = vld [vmem:[#allocation5 + $0x20] sm:$0xff]
    %v48 = vld [vmem:[#allocation5 + $0x28] sm:$0xff]
    %v49 = vld [vmem:[#allocation5 + $0x30] sm:$0xff]
    %v50 = vld [vmem:[#allocation5 + $0x38] sm:$0xff]
    %v51 = vld [vmem:[#allocation5 + $0x40] sm:$0xff]
    %v52 = vld [vmem:[#allocation5 + $0x48] sm:$0xff]
    %v53 = vld [vmem:[#allocation5 + $0x50] sm:$0xff]
    %v54 = vld [vmem:[#allocation5 + $0x58] sm:$0xff]
    %v55 = vld [vmem:[#allocation5 + $0x60] sm:$0xff]
    %v56 = vld [vmem:[#allocation5 + $0x68] sm:$0xff]
    %v57 = vld [vmem:[#allocation5 + $0x70] sm:$0xff]
    %v58 = vld [vmem:[#allocation5 + $0x78] sm:$0xff]
    %v59 = vld [vmem:[#allocation5 + $0x80] sm:$0xff]
    %v60 = vld [vmem:[#allocation5 + $0x88] sm:$0xff]
    %v61 = vld [vmem:[#allocation5 + $0x90] sm:$0xff]
    %v62 = vld [vmem:[#allocation5 + $0x98] sm:$0xff]
    %v63 = vld [vmem:[#allocation5 + $0xa0] sm:$0xff]
    %v64 = vld [vmem:[#allocation5 + $0xa8] sm:$0xff]
    %v65 = vld [vmem:[#allocation5 + $0xb0] sm:$0xff]
    %v66 = vld [vmem:[#allocation5 + $0xb8] sm:$0xff]
    %v67 = vld [vmem:[#allocation5 + $0xc0] sm:$0xff]
    %v68 = vld [vmem:[#allocation5 + $0xc8] sm:$0xff]
    %v69 = vld [vmem:[#allocation5 + $0xd0] sm:$0xff]
    %v70 = vld [vmem:[#allocation5 + $0xd8] sm:$0xff]
    %v71 = vld [vmem:[#allocation5 + $0xe0] sm:$0xff]
    %v72 = vld [vmem:[#allocation5 + $0xe8] sm:$0xff]
    %v73 = vld [vmem:[#allocation5 + $0xf0] sm:$0xff]
    %v74 = vld [vmem:[#allocation5 + $0xf8] sm:$0xff]
    %v75 = vpack.c.bf16 %v41, %v41
    %v76 = vpack.c.bf16 %v42, %v42
    %v77 = vunpack.c.l.bf16 %v75
    %v78 = vunpack.c.l.bf16 %v76
    %v79 = vsub.f32 %v41, %v77
    %v80 = vsub.f32 %v42, %v78
    %v81 = vpack.c.bf16 %v79, %v79
    %v82 = vpack.c.bf16 %v80, %v80
    %v115 = vunpack.c.l.b16 %v43
    %v116 = vunpack.c.h.b16 %v43
    %v117 = vunpack.c.l.b16 %v44
    %v118 = vunpack.c.h.b16 %v44
    %v119 = vunpack.c.l.b16 %v45
    %v120 = vunpack.c.h.b16 %v45
    %v121 = vunpack.c.l.b16 %v46
    %v122 = vunpack.c.h.b16 %v46
    %v123 = vunpack.c.l.b16 %v47
    %v124 = vunpack.c.h.b16 %v47
    %v125 = vunpack.c.l.b16 %v48
    %v126 = vunpack.c.h.b16 %v48
    %v127 = vunpack.c.l.b16 %v49
    %v128 = vunpack.c.h.b16 %v49
    %v129 = vunpack.c.l.b16 %v50
    %v130 = vunpack.c.h.b16 %v50
    %v131 = vunpack.c.l.b16 %v51
    %v132 = vunpack.c.h.b16 %v51
    %v133 = vunpack.c.l.b16 %v52
    %v134 = vunpack.c.h.b16 %v52
    %v135 = vunpack.c.l.b16 %v53
    %v136 = vunpack.c.h.b16 %v53
    %v137 = vunpack.c.l.b16 %v54
    %v138 = vunpack.c.h.b16 %v54
    %v139 = vunpack.c.l.b16 %v55
    %v140 = vunpack.c.h.b16 %v55
    %v141 = vunpack.c.l.b16 %v56
    %v142 = vunpack.c.h.b16 %v56
    %v143 = vunpack.c.l.b16 %v57
    %v144 = vunpack.c.h.b16 %v57
    %v145 = vunpack.c.l.b16 %v58
    %v146 = vunpack.c.h.b16 %v58
    %v147 = vunpack.c.l.b16 %v59
    %v148 = vunpack.c.h.b16 %v59
    %v149 = vunpack.c.l.b16 %v60
    %v150 = vunpack.c.h.b16 %v60
    %v151 = vunpack.c.l.b16 %v61
    %v152 = vunpack.c.h.b16 %v61
    %v153 = vunpack.c.l.b16 %v62
    %v154 = vunpack.c.h.b16 %v62
    %v155 = vunpack.c.l.b16 %v63
    %v156 = vunpack.c.h.b16 %v63
    %v157 = vunpack.c.l.b16 %v64
    %v158 = vunpack.c.h.b16 %v64
    %v159 = vunpack.c.l.b16 %v65
    %v160 = vunpack.c.h.b16 %v65
    %v161 = vunpack.c.l.b16 %v66
    %v162 = vunpack.c.h.b16 %v66
    %v163 = vunpack.c.l.b16 %v67
    %v164 = vunpack.c.h.b16 %v67
    %v165 = vunpack.c.l.b16 %v68
    %v166 = vunpack.c.h.b16 %v68
    %v167 = vunpack.c.l.b16 %v69
    %v168 = vunpack.c.h.b16 %v69
    %v169 = vunpack.c.l.b16 %v70
    %v170 = vunpack.c.h.b16 %v70
    %v171 = vunpack.c.l.b16 %v71
    %v172 = vunpack.c.h.b16 %v71
    %v173 = vunpack.c.l.b16 %v72
    %v174 = vunpack.c.h.b16 %v72
    %v175 = vunpack.c.l.b16 %v73
    %v176 = vunpack.c.h.b16 %v73
    %v177 = vunpack.c.l.b16 %v74
    %v178 = vunpack.c.h.b16 %v74
    %v179 = vpack.c.b16 %v117, %v115
    %v180 = vpack.c.b16 %v118, %v116
    %v181 = vpack.c.b16 %v121, %v119
    %v182 = vpack.c.b16 %v122, %v120
    %v183 = vpack.c.b16 %v125, %v123
    %v184 = vpack.c.b16 %v126, %v124
    %v185 = vpack.c.b16 %v129, %v127
    %v186 = vpack.c.b16 %v130, %v128
    %v187 = vpack.c.b16 %v133, %v131
    %v188 = vpack.c.b16 %v134, %v132
    %v189 = vpack.c.b16 %v137, %v135
    %v190 = vpack.c.b16 %v138, %v136
    %v191 = vpack.c.b16 %v141, %v139
    %v192 = vpack.c.b16 %v142, %v140
    %v193 = vpack.c.b16 %v145, %v143
    %v194 = vpack.c.b16 %v146, %v144
    %v195 = vpack.c.b16 %v149, %v147
    %v196 = vpack.c.b16 %v150, %v148
    %v197 = vpack.c.b16 %v153, %v151
    %v198 = vpack.c.b16 %v154, %v152
    %v199 = vpack.c.b16 %v157, %v155
    %v200 = vpack.c.b16 %v158, %v156
    %v201 = vpack.c.b16 %v161, %v159
    %v202 = vpack.c.b16 %v162, %v160
    %v203 = vpack.c.b16 %v165, %v163
    %v204 = vpack.c.b16 %v166, %v164
    %v205 = vpack.c.b16 %v169, %v167
    %v206 = vpack.c.b16 %v170, %v168
    %v207 = vpack.c.b16 %v173, %v171
    %v208 = vpack.c.b16 %v174, %v172
    %v209 = vpack.c.b16 %v177, %v175
    %v210 = vpack.c.b16 %v178, %v176
    %243 = vmatprep.subr.bf16.mxu0 %v180
    %244 = vmatpush1.bf16.msra.mxu0 %v179
    %245 = vmatprep.subr.bf16.mxu0 %v182
    %246 = vmatpush1.bf16.msra.mxu0 %v181
    %247 = vmatprep.subr.bf16.mxu0 %v184
    %248 = vmatpush1.bf16.msra.mxu0 %v183
    %249 = vmatprep.subr.bf16.mxu0 %v186
    %250 = vmatpush1.bf16.msra.mxu0 %v185
    %251 = vmatprep.subr.bf16.mxu0 %v188
    %252 = vmatpush1.bf16.msra.mxu0 %v187
    %253 = vmatprep.subr.bf16.mxu0 %v190
    %254 = vmatpush1.bf16.msra.mxu0 %v189
    %255 = vmatprep.subr.bf16.mxu0 %v192
    %256 = vmatpush1.bf16.msra.mxu0 %v191
    %257 = vmatprep.subr.bf16.mxu0 %v194
    %258 = vmatpush1.bf16.msra.mxu0 %v193
    %259 = vmatprep.subr.bf16.mxu0 %v196
    %260 = vmatpush1.bf16.msra.mxu0 %v195
    %261 = vmatprep.subr.bf16.mxu0 %v198
    %262 = vmatpush1.bf16.msra.mxu0 %v197
    %263 = vmatprep.subr.bf16.mxu0 %v200
    %264 = vmatpush1.bf16.msra.mxu0 %v199
    %265 = vmatprep.subr.bf16.mxu0 %v202
    %266 = vmatpush1.bf16.msra.mxu0 %v201
    %267 = vmatprep.subr.bf16.mxu0 %v204
    %268 = vmatpush1.bf16.msra.mxu0 %v203
    %269 = vmatprep.subr.bf16.mxu0 %v206
    %270 = vmatpush1.bf16.msra.mxu0 %v205
    %271 = vmatprep.subr.bf16.mxu0 %v208
    %272 = vmatpush1.bf16.msra.mxu0 %v207
    %273 = vmatprep.subr.bf16.mxu0 %v210
    %274 = vmatpush1.bf16.msra.mxu0 %v209
    %275 = vmatprep.mubr.bf16.mxu0 %v82
    %276 = vmatmul.mubr.bf16.gmra.mrb[0].mxu0 %v81
    %v277 = vpop.f32.mrb[0].mxu0
    %v278 = vadd.f32 0.0, %v277
    %v279 = vpop.f32.mrb[0].mxu0
    %v280 = vadd.f32 0.0, %v279
    %v281 = vpop.f32.mrb[0].mxu0
    %v282 = vpop.f32.mrb[0].mxu0
    %283 = vdwg.mxu0
    %284 = vmatprep.subr.bf16.mxu0 %v180
    %285 = vmatpush1.bf16.msra.mxu0 %v179
    %286 = vmatprep.subr.bf16.mxu0 %v182
    %287 = vmatpush1.bf16.msra.mxu0 %v181
    %288 = vmatprep.subr.bf16.mxu0 %v184
    %289 = vmatpush1.bf16.msra.mxu0 %v183
    %290 = vmatprep.subr.bf16.mxu0 %v186
    %291 = vmatpush1.bf16.msra.mxu0 %v185
    %292 = vmatprep.subr.bf16.mxu0 %v188
    %293 = vmatpush1.bf16.msra.mxu0 %v187
    %294 = vmatprep.subr.bf16.mxu0 %v190
    %295 = vmatpush1.bf16.msra.mxu0 %v189
    %296 = vmatprep.subr.bf16.mxu0 %v192
    %297 = vmatpush1.bf16.msra.mxu0 %v191
    %298 = vmatprep.subr.bf16.mxu0 %v194
    %299 = vmatpush1.bf16.msra.mxu0 %v193
    %300 = vmatprep.subr.bf16.mxu0 %v196
    %301 = vmatpush1.bf16.msra.mxu0 %v195
    %302 = vmatprep.subr.bf16.mxu0 %v198
    %303 = vmatpush1.bf16.msra.mxu0 %v197
    %304 = vmatprep.subr.bf16.mxu0 %v200
    %305 = vmatpush1.bf16.msra.mxu0 %v199
    %306 = vmatprep.subr.bf16.mxu0 %v202
    %307 = vmatpush1.bf16.msra.mxu0 %v201
    %308 = vmatprep.subr.bf16.mxu0 %v204
    %309 = vmatpush1.bf16.msra.mxu0 %v203
    %310 = vmatprep.subr.bf16.mxu0 %v206
    %311 = vmatpush1.bf16.msra.mxu0 %v205
    %312 = vmatprep.subr.bf16.mxu0 %v208
    %313 = vmatpush1.bf16.msra.mxu0 %v207
    %314 = vmatprep.subr.bf16.mxu0 %v210
    %315 = vmatpush1.bf16.msra.mxu0 %v209
    %316 = vmatprep.mubr.bf16.mxu0 %v76
    %317 = vmatmul.mubr.bf16.gmra.mrb[0].mxu0 %v75
    %v318 = vpop.f32.mrb[0].mxu0
    %v319 = vadd.f32 %v278, %v318
    %v320 = vpop.f32.mrb[0].mxu0
    %v321 = vadd.f32 %v280, %v320
    %v322 = vpop.f32.mrb[0].mxu0
    %v323 = vpop.f32.mrb[0].mxu0
    %324 = vdwg.mxu0
    %325 = vst [vmem:[#allocation7] sm:$0xff] %v319
    %326 = vst [vmem:[#allocation8] sm:$0xff] %v321
    // Predicated region
    $region18: #{tpu_custom_call.1} parent=1 // pred_check
      _
    $region19: #{tpu_custom_call.1} parent=1 // pred_check_branch
      %328 = sbr.rel (0) target = $region21
    $region20: #{tpu_custom_call.1} parent=1 // pred_region
      %s330 = ssub.s32 128, 128
      %331 = vsyncadd [#allocation4], %s330
      %s333 = sshll.u32 [#allocation7], 4
      %s334 = int_to_ptr.vmem [resolvable:$true] %s333
      %336 = dma.vmem_to_hbm [thread:$0]  %s334, 128, %s2, [#allocation4]
    $region21: #{tpu_custom_call.1} parent=1 // pred_fallthru
      _
    // Predicated region
    $region22: #{tpu_custom_call.1} parent=1 // pred_check
      _
    $region23: #{tpu_custom_call.1} parent=1 // pred_check_branch
      %338 = sbr.rel (0) target = $region25
    $region24: #{tpu_custom_call.1} parent=1 // pred_region
      %s340 = ssub.s32 128, 128
      %341 = vsyncadd [#allocation9], %s340
      %s343 = sshll.u32 [#allocation8], 4
      %s344 = int_to_ptr.vmem [resolvable:$true] %s343
      %346 = dma.vmem_to_hbm [thread:$0]  %s344, 128, %s3, [#allocation9]
    $region25: #{tpu_custom_call.1} parent=1 // pred_fallthru
      _
    // Predicated region
    $region26: #{tpu_custom_call.1} parent=1 // pred_check
      _
    $region27: #{tpu_custom_call.1} parent=1 // pred_check_branch
      %348 = sbr.rel (0) target = $region29
    $region28: #{tpu_custom_call.1} parent=1 // pred_region
      %349 = dma.done [#allocation4], 128
    $region29: #{tpu_custom_call.1} parent=1 // pred_fallthru
      _
    // Predicated region
    $region30: #{tpu_custom_call.1} parent=1 // pred_check
      _
    $region31: #{tpu_custom_call.1} parent=1 // pred_check_branch
      %351 = sbr.rel (0) target = $region33
    $region32: #{tpu_custom_call.1} parent=1 // pred_region
      %352 = dma.done [#allocation9], 128
    $region33: #{tpu_custom_call.1} parent=1 // pred_fallthru
      _
    %353 = vsyncpa [#allocation3], 1
    %354 = vsyncpa [#allocation6], 1
    %355 = vsyncpa [#allocation4], 1
    %356 = vsyncpa [#allocation9], 1

</llo_original>
